<compile_context>
chip_gen: v5e
topology: v5e:2x2
jax: 0.10.0
libtpu: 0.0.40
codegen_flags: <defaults>
</compile_context>

<pallas_src>
import functools

import jax
import jax.numpy as jnp
import numpy as np
from jax.experimental import pallas as pl
from jax.experimental.pallas import tpu as pltpu

LN_EPS = 1e-5


def _round_up(n, m):
    return ((n + m - 1) // m) * m


def _pad2d(a, shape):
    pads = [(0, t - s) for s, t in zip(a.shape, shape)]
    if all(p == (0, 0) for p in pads):
        return a
    return jnp.pad(a, pads)


def _mixer_kernel(x_ref, gamma_ref, beta_ref, w1_ref, b1_ref, w2_ref, b2_ref,
                  o_ref, *, d_real, d_pad):
    """One (tm, Dp) row tile: LayerNorm -> Linear1 -> ReLU -> Linear2 -> +x."""
    x = x_ref[...]
    xf = x.astype(jnp.float32)

    # --- LayerNorm over the *real* feature lanes, statistics in f32 ---
    inv_d = jnp.float32(1.0 / d_real)
    mean = jnp.sum(xf, axis=-1, keepdims=True) * inv_d   # padded lanes are 0
    xc = xf - mean
    if d_pad != d_real:
        # Padded lanes of xc are (-mean); mask them out of the variance sum.
        lane = jax.lax.broadcasted_iota(jnp.int32, xc.shape, 1)
        xc_sq = jnp.where(lane < d_real, xc, 0.0)
    else:
        xc_sq = xc
    var = jnp.sum(xc_sq * xc_sq, axis=-1, keepdims=True) * inv_d
    inv = jax.lax.rsqrt(var + LN_EPS)
    # Padded lanes of gamma/beta are zero -> xn is exactly zero there.
    xn = xc * inv * gamma_ref[...] + beta_ref[...]

    # --- Linear1 + ReLU (MXU, f32 accumulation) ---
    cd = w1_ref.dtype
    h = jnp.dot(xn.astype(cd), w1_ref[...], preferred_element_type=jnp.float32)
    h = jnp.maximum(h + b1_ref[...], 0.0)

    # --- Linear2 + bias + residual in f32, then cast to output dtype ---
    y = jnp.dot(h.astype(cd), w2_ref[...], preferred_element_type=jnp.float32)
    y = y + b2_ref[...] + xf
    o_ref[...] = y.astype(o_ref.dtype)


@functools.partial(
    jax.jit, static_argnames=("tm", "compute_dtype", "single_buffer_consts"))
def _feature_mixer_impl(x, gamma, beta, w1, b1, w2, b2, *, tm, compute_dtype,
                        single_buffer_consts):
    orig_shape = x.shape
    D = x.shape[-1]
    H = w1.shape[1]
    M = 1
    for s in x.shape[:-1]:
        M *= s

    # Lane-dense (128-multiple) feature dims.
    Dp = _round_up(D, 128)
    Hp = _round_up(H, 128)

    # Row tile: as large as `tm` allows; split across >=2 grid steps (for
    # megacore sharding) only when each half is still a full-size tile, so
    # tiny problems keep a single low-overhead grid step.
    tm_eff = min(tm, _round_up(M, 8))
    if pl.cdiv(M, tm_eff) < 2 and M >= 2 * tm:
        tm_eff = _round_up(pl.cdiv(M, 2), 8)
    Mp = _round_up(M, tm_eff)
    grid = (Mp // tm_eff,)

    # Pad / cast operands once, outside the grid loop.
    x2 = _pad2d(x.reshape(M, D), (Mp, Dp))
    gamma_p = _pad2d(gamma.astype(jnp.float32).reshape(1, D), (1, Dp))
    beta_p = _pad2d(beta.astype(jnp.float32).reshape(1, D), (1, Dp))
    b1_p = _pad2d(b1.astype(jnp.float32).reshape(1, H), (1, Hp))
    b2_p = _pad2d(b2.astype(jnp.float32).reshape(1, D), (1, Dp))
    w1_p = _pad2d(w1.astype(compute_dtype), (Dp, Hp))
    w2_p = _pad2d(w2.astype(compute_dtype), (Hp, Dp))

    in_isz = x.dtype.itemsize
    cd_isz = np.dtype(compute_dtype).itemsize

    # Constant-index operands are DMA'd once; don't double-buffer them.
    const_kwargs = {}
    if single_buffer_consts:
        const_kwargs = dict(pipeline_mode=pl.Buffered(1))

    def _const_spec(shape):
        return pl.BlockSpec(shape, lambda i: (0, 0), **const_kwargs)

    grid_spec = pltpu.PrefetchScalarGridSpec(
        num_scalar_prefetch=0,
        grid=grid,
        in_specs=[
            pl.BlockSpec((tm_eff, Dp), lambda i: (i, 0)),  # x rows
            _const_spec((1, Dp)),    # gamma
            _const_spec((1, Dp)),    # beta
            _const_spec((Dp, Hp)),   # W1
            _const_spec((1, Hp)),    # b1
            _const_spec((Hp, Dp)),   # W2
            _const_spec((1, Dp)),    # b2
        ],
        out_specs=pl.BlockSpec((tm_eff, Dp), lambda i: (i, 0)),
    )

    # VMEM budget: double-buffered x/out tiles, (single-)buffered weights,
    # plus live f32 intermediates; generous margin, capped at 64 MiB (v7x).
    nbuf_c = 1 if single_buffer_consts else 2
    vmem_est = (2 * tm_eff * Dp * in_isz            # x tiles
                + 2 * tm_eff * Dp * in_isz          # out tiles
                + nbuf_c * 2 * Dp * Hp * cd_isz     # W1 + W2
                + nbuf_c * (3 * Dp + Hp) * 4        # gamma/beta/b1/b2
                + 4 * tm_eff * (3 * Dp + Hp))       # f32 intermediates
    vmem_limit = int(min(max(2 * vmem_est, 32 * 1024 * 1024),
                         64 * 1024 * 1024))

    cost = pl.CostEstimate(
        flops=int(4 * Mp * Dp * Hp),                 # two matmuls
        transcendentals=int(Mp),                     # rsqrt per row
        bytes_accessed=int(2 * Mp * Dp * in_isz + 2 * Dp * Hp * cd_isz
                           + (3 * Dp + Hp) * 4))

    kernel = functools.partial(_mixer_kernel, d_real=D, d_pad=Dp)

    out = pl.pallas_call(
        kernel,
        out_shape=jax.ShapeDtypeStruct((Mp, Dp), x.dtype),
        grid_spec=grid_spec,
        compiler_params=pltpu.CompilerParams(
            dimension_semantics=("parallel",),
            vmem_limit_bytes=vmem_limit),
        cost_estimate=cost,
    )(x2, gamma_p, beta_p, w1_p, b1_p, w2_p, b2_p)

    return out[:M, :D].reshape(orig_shape)


def feature_mixer_layer(x, gamma, beta, w1, b1, w2, b2, *, tm=256,
                        compute_dtype=None):
    """x: (..., D). gamma/beta: (D,), w1: (D, H), b1: (H,), w2: (H, D), b2: (D,).

    compute_dtype sets the matmul-operand dtype (e.g. jnp.bfloat16 on
    bf16-native MXUs); LN statistics, biases and the residual stay f32.
    """
    if compute_dtype is None:
        compute_dtype = x.dtype
    compute_dtype = np.dtype(compute_dtype)
    kwargs = dict(tm=tm, compute_dtype=compute_dtype)
    try:
        return _feature_mixer_impl(x, gamma, beta, w1, b1, w2, b2,
                                   single_buffer_consts=True, **kwargs)
    except Exception:
        # Fallback for JAX versions where pipeline_mode=pl.Buffered(1) is not
        # accepted on the main pallas_call pipeline.
        return _feature_mixer_impl(x, gamma, beta, w1, b1, w2, b2,
                                   single_buffer_consts=False, **kwargs)


def _reference(x, gamma, beta, w1, b1, w2, b2):
    mean = jnp.mean(x, axis=-1, keepdims=True)
    var = jnp.mean((x - mean) ** 2, axis=-1, keepdims=True)
    xn = (x - mean) * jax.lax.rsqrt(var + LN_EPS) * gamma + beta
    h = jnp.maximum(xn @ w1 + b1, 0.0)
    return x + (h @ w2 + b2)


if __name__ == "__main__":
    key = jax.random.PRNGKey(0)

    # MixVPR-style input: (B, C, in_dim) with in_dim = flattened spatial dim.
    B, C, D = 2, 8, 32
    mlp_ratio = 1
    H = int(D * mlp_ratio)

    k_x, k_w1, k_w2 = jax.random.split(key, 3)
    x = jax.random.normal(k_x, (B, C, D), dtype=jnp.float32)

    # LayerNorm init: gamma=1, beta=0; Linear init: trunc_normal(std=0.02), zero bias.
    gamma = jnp.ones((D,), jnp.float32)
    beta = jnp.zeros((D,), jnp.float32)
    w1 = 0.02 * jax.random.truncated_normal(k_w1, -2.0, 2.0, (D, H), jnp.float32)
    b1 = jnp.zeros((H,), jnp.float32)
    w2 = 0.02 * jax.random.truncated_normal(k_w2, -2.0, 2.0, (H, D), jnp.float32)
    b2 = jnp.zeros((D,), jnp.float32)

    out = jax.block_until_ready(
        feature_mixer_layer(x, gamma, beta, w1, b1, w2, b2))
    ref = _reference(x, gamma, beta, w1, b1, w2, b2)
    assert out.shape == x.shape and out.dtype == x.dtype
    assert jnp.allclose(out, ref, atol=1e-5, rtol=1e-5)

    # Ragged row count + non-multiple-of-128 feature dim (row & lane padding).
    k_x2, k_w3, k_w4 = jax.random.split(jax.random.PRNGKey(1), 3)
    B2, C2, D2 = 3, 7, 96
    H2 = D2
    x_b = jax.random.normal(k_x2, (B2, C2, D2), dtype=jnp.float32)
    g_b = jnp.ones((D2,), jnp.float32)
    be_b = jnp.zeros((D2,), jnp.float32)
    w1_b = 0.02 * jax.random.truncated_normal(k_w3, -2.0, 2.0, (D2, H2), jnp.float32)
    b1_b = jnp.zeros((H2,), jnp.float32)
    w2_b = 0.02 * jax.random.truncated_normal(k_w4, -2.0, 2.0, (H2, D2), jnp.float32)
    b2_b = jnp.zeros((D2,), jnp.float32)
    out_b = jax.block_until_ready(
        feature_mixer_layer(x_b, g_b, be_b, w1_b, b1_b, w2_b, b2_b))
    ref_b = _reference(x_b, g_b, be_b, w1_b, b1_b, w2_b, b2_b)
    assert jnp.allclose(out_b, ref_b, atol=1e-4, rtol=1e-4)

    # bf16 matmul operands with f32 accumulation (v6e / v7x fast path).
    out_bf16 = jax.block_until_ready(
        feature_mixer_layer(x, gamma, beta, w1, b1, w2, b2,
                            compute_dtype=jnp.bfloat16))
    assert jnp.allclose(out_bf16, ref, atol=3e-2, rtol=3e-2)

    print("KERNEL_OK")
</pallas_src>

<mosaic_0001>
module attributes {stable_mosaic.version = 11 : i64} {
  func.func @_mixer_kernel(%arg0: i32, %arg1: memref<16x128xf32, #tpu.memory_space<vmem>>, %arg2: memref<1x128xf32, #tpu.memory_space<vmem>>, %arg3: memref<1x128xf32, #tpu.memory_space<vmem>>, %arg4: memref<128x128xf32, #tpu.memory_space<vmem>>, %arg5: memref<1x128xf32, #tpu.memory_space<vmem>>, %arg6: memref<128x128xf32, #tpu.memory_space<vmem>>, %arg7: memref<1x128xf32, #tpu.memory_space<vmem>>, %arg8: memref<16x128xf32, #tpu.memory_space<vmem>>) attributes {dimension_semantics = [#tpu.dimension_semantics<parallel>], iteration_bounds = array<i64: 1>, scalar_prefetch = 0 : i64, scratch_operands = 0 : i64, tpu.core_type = #tpu.core_type<tc>, window_params = [{transform_indices = @transform_0, window_bounds = array<i64: 16, 128>}, {pipeline_mode = #tpu.pipeline_mode<synchronous>, transform_indices = @transform_1, window_bounds = array<i64: 1, 128>}, {pipeline_mode = #tpu.pipeline_mode<synchronous>, transform_indices = @transform_2, window_bounds = array<i64: 1, 128>}, {pipeline_mode = #tpu.pipeline_mode<synchronous>, transform_indices = @transform_3, window_bounds = array<i64: 128, 128>}, {pipeline_mode = #tpu.pipeline_mode<synchronous>, transform_indices = @transform_4, window_bounds = array<i64: 1, 128>}, {pipeline_mode = #tpu.pipeline_mode<synchronous>, transform_indices = @transform_5, window_bounds = array<i64: 128, 128>}, {pipeline_mode = #tpu.pipeline_mode<synchronous>, transform_indices = @transform_6, window_bounds = array<i64: 1, 128>}, {transform_indices = @transform_7, window_bounds = array<i64: 16, 128>}]} {
    %c0 = arith.constant 0 : index
    %c0_0 = arith.constant 0 : index
    %0 = vector.load %arg1[%c0, %c0_0] : memref<16x128xf32, #tpu.memory_space<vmem>>, vector<16x128xf32>
    %cst = arith.constant dense<0.000000e+00> : vector<16xf32>
    %1 = vector.multi_reduction <add>, %0, %cst [1] : vector<16x128xf32> to vector<16xf32>
    %2 = vector.shape_cast %1 : vector<16xf32> to vector<16x1xf32>
    %cst_1 = arith.constant 3.125000e-02 : f32
    %3 = vector.broadcast %cst_1 : f32 to vector<16x1xf32>
    %4 = arith.mulf %2, %3 : vector<16x1xf32>
    %5 = vector.broadcast %4 : vector<16x1xf32> to vector<16x128xf32>
    %6 = arith.subf %0, %5 : vector<16x128xf32>
    %7 = tpu.iota {dimensions = array<i32: 1>} : vector<16x128xi32>
    %c32_i32 = arith.constant 32 : i32
    %8 = vector.broadcast %c32_i32 : i32 to vector<16x128xi32>
    %9 = arith.cmpi slt, %7, %8 : vector<16x128xi32>
    %cst_2 = arith.constant 0.000000e+00 : f32
    %10 = vector.broadcast %cst_2 : f32 to vector<16x128xf32>
    %11 = arith.select %9, %6, %10 : vector<16x128xi1>, vector<16x128xf32>
    %12 = arith.mulf %11, %11 : vector<16x128xf32>
    %cst_3 = arith.constant dense<0.000000e+00> : vector<16xf32>
    %13 = vector.multi_reduction <add>, %12, %cst_3 [1] : vector<16x128xf32> to vector<16xf32>
    %14 = vector.shape_cast %13 : vector<16xf32> to vector<16x1xf32>
    %cst_4 = arith.constant 3.125000e-02 : f32
    %15 = vector.broadcast %cst_4 : f32 to vector<16x1xf32>
    %16 = arith.mulf %14, %15 : vector<16x1xf32>
    %cst_5 = arith.constant 9.99999974E-6 : f32
    %17 = vector.broadcast %cst_5 : f32 to vector<16x1xf32>
    %18 = arith.addf %16, %17 : vector<16x1xf32>
    %19 = math.rsqrt %18 : vector<16x1xf32>
    %20 = vector.broadcast %19 : vector<16x1xf32> to vector<16x128xf32>
    %21 = arith.mulf %6, %20 : vector<16x128xf32>
    %c0_6 = arith.constant 0 : index
    %c0_7 = arith.constant 0 : index
    %22 = vector.load %arg2[%c0_6, %c0_7] : memref<1x128xf32, #tpu.memory_space<vmem>>, vector<1x128xf32>
    %23 = vector.broadcast %22 : vector<1x128xf32> to vector<16x128xf32>
    %24 = arith.mulf %21, %23 : vector<16x128xf32>
    %c0_8 = arith.constant 0 : index
    %c0_9 = arith.constant 0 : index
    %25 = vector.load %arg3[%c0_8, %c0_9] : memref<1x128xf32, #tpu.memory_space<vmem>>, vector<1x128xf32>
    %26 = vector.broadcast %25 : vector<1x128xf32> to vector<16x128xf32>
    %27 = arith.addf %24, %26 : vector<16x128xf32>
    %c0_10 = arith.constant 0 : index
    %c0_11 = arith.constant 0 : index
    %28 = vector.load %arg4[%c0_10, %c0_11] : memref<128x128xf32, #tpu.memory_space<vmem>>, vector<128x128xf32>
    %cst_12 = arith.constant dense<0.000000e+00> : vector<16x128xf32>
    %29 = tpu.matmul %27, %28, %cst_12 {dimension_numbers = #tpu.dot_dimension_numbers<[1], [0], [0], [1], [0, 0, 1, 1], [], []>} : vector<16x128xf32>, vector<128x128xf32>, vector<16x128xf32> -> vector<16x128xf32>
    %c0_13 = arith.constant 0 : index
    %c0_14 = arith.constant 0 : index
    %30 = vector.load %arg5[%c0_13, %c0_14] : memref<1x128xf32, #tpu.memory_space<vmem>>, vector<1x128xf32>
    %31 = vector.broadcast %30 : vector<1x128xf32> to vector<16x128xf32>
    %32 = arith.addf %29, %31 : vector<16x128xf32>
    %cst_15 = arith.constant 0.000000e+00 : f32
    %33 = vector.broadcast %cst_15 : f32 to vector<16x128xf32>
    %34 = arith.maximumf %32, %33 : vector<16x128xf32>
    %c0_16 = arith.constant 0 : index
    %c0_17 = arith.constant 0 : index
    %35 = vector.load %arg6[%c0_16, %c0_17] : memref<128x128xf32, #tpu.memory_space<vmem>>, vector<128x128xf32>
    %cst_18 = arith.constant dense<0.000000e+00> : vector<16x128xf32>
    %36 = tpu.matmul %34, %35, %cst_18 {dimension_numbers = #tpu.dot_dimension_numbers<[1], [0], [0], [1], [0, 0, 1, 1], [], []>} : vector<16x128xf32>, vector<128x128xf32>, vector<16x128xf32> -> vector<16x128xf32>
    %c0_19 = arith.constant 0 : index
    %c0_20 = arith.constant 0 : index
    %37 = vector.load %arg7[%c0_19, %c0_20] : memref<1x128xf32, #tpu.memory_space<vmem>>, vector<1x128xf32>
    %38 = vector.broadcast %37 : vector<1x128xf32> to vector<16x128xf32>
    %39 = arith.addf %36, %38 : vector<16x128xf32>
    %40 = arith.addf %39, %0 : vector<16x128xf32>
    %c0_21 = arith.constant 0 : index
    %c0_22 = arith.constant 0 : index
    %41 = vector.load %arg8[%c0_21, %c0_22] : memref<16x128xf32, #tpu.memory_space<vmem>>, vector<16x128xf32>
    tpu.vector_store %arg8[%c0_21, %c0_22], %40 {strides = array<i32>} : memref<16x128xf32, #tpu.memory_space<vmem>>, vector<16x128xf32>,
    return
  }
  func.func @transform_0(%arg0: i32) -> (i32, i32) {
    %c0_i32 = arith.constant 0 : i32
    %c0_i32_0 = arith.constant 0 : i32
    return %arg0, %c0_i32 : i32, i32
  }
  func.func @transform_1(%arg0: i32) -> (i32, i32) {
    %c0_i32 = arith.constant 0 : i32
    %c0_i32_0 = arith.constant 0 : i32
    %c0_i32_1 = arith.constant 0 : i32
    return %c0_i32, %c0_i32_0 : i32, i32
  }
  func.func @transform_2(%arg0: i32) -> (i32, i32) {
    %c0_i32 = arith.constant 0 : i32
    %c0_i32_0 = arith.constant 0 : i32
    %c0_i32_1 = arith.constant 0 : i32
    return %c0_i32, %c0_i32_0 : i32, i32
  }
  func.func @transform_3(%arg0: i32) -> (i32, i32) {
    %c0_i32 = arith.constant 0 : i32
    %c0_i32_0 = arith.constant 0 : i32
    %c0_i32_1 = arith.constant 0 : i32
    return %c0_i32, %c0_i32_0 : i32, i32
  }
  func.func @transform_4(%arg0: i32) -> (i32, i32) {
    %c0_i32 = arith.constant 0 : i32
    %c0_i32_0 = arith.constant 0 : i32
    %c0_i32_1 = arith.constant 0 : i32
    return %c0_i32, %c0_i32_0 : i32, i32
  }
  func.func @transform_5(%arg0: i32) -> (i32, i32) {
    %c0_i32 = arith.constant 0 : i32
    %c0_i32_0 = arith.constant 0 : i32
    %c0_i32_1 = arith.constant 0 : i32
    return %c0_i32, %c0_i32_0 : i32, i32
  }
  func.func @transform_6(%arg0: i32) -> (i32, i32) {
    %c0_i32 = arith.constant 0 : i32
    %c0_i32_0 = arith.constant 0 : i32
    %c0_i32_1 = arith.constant 0 : i32
    return %c0_i32, %c0_i32_0 : i32, i32
  }
  func.func @transform_7(%arg0: i32) -> (i32, i32) {
    %c0_i32 = arith.constant 0 : i32
    %c0_i32_0 = arith.constant 0 : i32
    return %arg0, %c0_i32 : i32, i32
  }
}

module attributes {stable_mosaic.version = 11 : i64} {
  func.func @_mixer_kernel(%arg0: i32, %arg1: memref<16x128xf32, #tpu.memory_space<vmem>>, %arg2: memref<1x128xf32, #tpu.memory_space<vmem>>, %arg3: memref<1x128xf32, #tpu.memory_space<vmem>>, %arg4: memref<128x128xf32, #tpu.memory_space<vmem>>, %arg5: memref<1x128xf32, #tpu.memory_space<vmem>>, %arg6: memref<128x128xf32, #tpu.memory_space<vmem>>, %arg7: memref<1x128xf32, #tpu.memory_space<vmem>>, %arg8: memref<16x128xf32, #tpu.memory_space<vmem>>) attributes {dimension_semantics = [#tpu.dimension_semantics<parallel>], iteration_bounds = array<i64: 1>, scalar_prefetch = 0 : i64, scratch_operands = 0 : i64, tpu.core_type = #tpu.core_type<tc>, window_params = [{transform_indices = @transform_0, window_bounds = array<i64: 16, 128>}, {pipeline_mode = #tpu.pipeline_mode<synchronous>, transform_indices = @transform_1, window_bounds = array<i64: 1, 128>}, {pipeline_mode = #tpu.pipeline_mode<synchronous>, transform_indices = @transform_2, window_bounds = array<i64: 1, 128>}, {pipeline_mode = #tpu.pipeline_mode<synchronous>, transform_indices = @transform_3, window_bounds = array<i64: 128, 128>}, {pipeline_mode = #tpu.pipeline_mode<synchronous>, transform_indices = @transform_4, window_bounds = array<i64: 1, 128>}, {pipeline_mode = #tpu.pipeline_mode<synchronous>, transform_indices = @transform_5, window_bounds = array<i64: 128, 128>}, {pipeline_mode = #tpu.pipeline_mode<synchronous>, transform_indices = @transform_6, window_bounds = array<i64: 1, 128>}, {transform_indices = @transform_7, window_bounds = array<i64: 16, 128>}]} {
    %c0 = arith.constant 0 : index
    %c0_0 = arith.constant 0 : index
    %0 = vector.load %arg1[%c0, %c0_0] : memref<16x128xf32, #tpu.memory_space<vmem>>, vector<16x128xf32>
    %cst = arith.constant dense<0.000000e+00> : vector<16xf32>
    %1 = vector.multi_reduction <add>, %0, %cst [1] : vector<16x128xf32> to vector<16xf32>
    %2 = vector.shape_cast %1 : vector<16xf32> to vector<16x1xf32>
    %cst_1 = arith.constant 3.125000e-02 : f32
    %3 = vector.broadcast %cst_1 : f32 to vector<16x1xf32>
    %4 = arith.mulf %2, %3 : vector<16x1xf32>
    %5 = vector.broadcast %4 : vector<16x1xf32> to vector<16x128xf32>
    %6 = arith.subf %0, %5 : vector<16x128xf32>
    %7 = tpu.iota {dimensions = array<i32: 1>} : vector<16x128xi32>
    %c32_i32 = arith.constant 32 : i32
    %8 = vector.broadcast %c32_i32 : i32 to vector<16x128xi32>
    %9 = arith.cmpi slt, %7, %8 : vector<16x128xi32>
    %cst_2 = arith.constant 0.000000e+00 : f32
    %10 = vector.broadcast %cst_2 : f32 to vector<16x128xf32>
    %11 = arith.select %9, %6, %10 : vector<16x128xi1>, vector<16x128xf32>
    %12 = arith.mulf %11, %11 : vector<16x128xf32>
    %cst_3 = arith.constant dense<0.000000e+00> : vector<16xf32>
    %13 = vector.multi_reduction <add>, %12, %cst_3 [1] : vector<16x128xf32> to vector<16xf32>
    %14 = vector.shape_cast %13 : vector<16xf32> to vector<16x1xf32>
    %cst_4 = arith.constant 3.125000e-02 : f32
    %15 = vector.broadcast %cst_4 : f32 to vector<16x1xf32>
    %16 = arith.mulf %14, %15 : vector<16x1xf32>
    %cst_5 = arith.constant 9.99999974E-6 : f32
    %17 = vector.broadcast %cst_5 : f32 to vector<16x1xf32>
    %18 = arith.addf %16, %17 : vector<16x1xf32>
    %19 = math.rsqrt %18 : vector<16x1xf32>
    %20 = vector.broadcast %19 : vector<16x1xf32> to vector<16x128xf32>
    %21 = arith.mulf %6, %20 : vector<16x128xf32>
    %c0_6 = arith.constant 0 : index
    %c0_7 = arith.constant 0 : index
    %22 = vector.load %arg2[%c0_6, %c0_7] : memref<1x128xf32, #tpu.memory_space<vmem>>, vector<1x128xf32>
    %23 = vector.broadcast %22 : vector<1x128xf32> to vector<16x128xf32>
    %24 = arith.mulf %21, %23 : vector<16x128xf32>
    %c0_8 = arith.constant 0 : index
    %c0_9 = arith.constant 0 : index
    %25 = vector.load %arg3[%c0_8, %c0_9] : memref<1x128xf32, #tpu.memory_space<vmem>>, vector<1x128xf32>
    %26 = vector.broadcast %25 : vector<1x128xf32> to vector<16x128xf32>
    %27 = arith.addf %24, %26 : vector<16x128xf32>
    %c0_10 = arith.constant 0 : index
    %c0_11 = arith.constant 0 : index
    %28 = vector.load %arg4[%c0_10, %c0_11] : memref<128x128xf32, #tpu.memory_space<vmem>>, vector<128x128xf32>
    %cst_12 = arith.constant dense<0.000000e+00> : vector<16x128xf32>
    %29 = tpu.matmul %27, %28, %cst_12 {dimension_numbers = #tpu.dot_dimension_numbers<[1], [0], [0], [1], [0, 0, 1, 1], [], []>} : vector<16x128xf32>, vector<128x128xf32>, vector<16x128xf32> -> vector<16x128xf32>
    %c0_13 = arith.constant 0 : index
    %c0_14 = arith.constant 0 : index
    %30 = vector.load %arg5[%c0_13, %c0_14] : memref<1x128xf32, #tpu.memory_space<vmem>>, vector<1x128xf32>
    %31 = vector.broadcast %30 : vector<1x128xf32> to vector<16x128xf32>
    %32 = arith.addf %29, %31 : vector<16x128xf32>
    %cst_15 = arith.constant 0.000000e+00 : f32
    %33 = vector.broadcast %cst_15 : f32 to vector<16x128xf32>
    %34 = arith.maximumf %32, %33 : vector<16x128xf32>
    %c0_16 = arith.constant 0 : index
    %c0_17 = arith.constant 0 : index
    %35 = vector.load %arg6[%c0_16, %c0_17] : memref<128x128xf32, #tpu.memory_space<vmem>>, vector<128x128xf32>
    %cst_18 = arith.constant dense<0.000000e+00> : vector<16x128xf32>
    %36 = tpu.matmul %34, %35, %cst_18 {dimension_numbers = #tpu.dot_dimension_numbers<[1], [0], [0], [1], [0, 0, 1, 1], [], []>} : vector<16x128xf32>, vector<128x128xf32>, vector<16x128xf32> -> vector<16x128xf32>
    %c0_19 = arith.constant 0 : index
    %c0_20 = arith.constant 0 : index
    %37 = vector.load %arg7[%c0_19, %c0_20] : memref<1x128xf32, #tpu.memory_space<vmem>>, vector<1x128xf32>
    %38 = vector.broadcast %37 : vector<1x128xf32> to vector<16x128xf32>
    %39 = arith.addf %36, %38 : vector<16x128xf32>
    %40 = arith.addf %39, %0 : vector<16x128xf32>
    %c0_21 = arith.constant 0 : index
    %c0_22 = arith.constant 0 : index
    %41 = vector.load %arg8[%c0_21, %c0_22] : memref<16x128xf32, #tpu.memory_space<vmem>>, vector<16x128xf32>
    tpu.vector_store %arg8[%c0_21, %c0_22], %40 {strides = array<i32>} : memref<16x128xf32, #tpu.memory_space<vmem>>, vector<16x128xf32>,
    return
  }
  func.func @transform_0(%arg0: i32) -> (i32, i32) {
    %c0_i32 = arith.constant 0 : i32
    %c0_i32_0 = arith.constant 0 : i32
    return %arg0, %c0_i32 : i32, i32
  }
  func.func @transform_1(%arg0: i32) -> (i32, i32) {
    %c0_i32 = arith.constant 0 : i32
    %c0_i32_0 = arith.constant 0 : i32
    %c0_i32_1 = arith.constant 0 : i32
    return %c0_i32, %c0_i32_0 : i32, i32
  }
  func.func @transform_2(%arg0: i32) -> (i32, i32) {
    %c0_i32 = arith.constant 0 : i32
    %c0_i32_0 = arith.constant 0 : i32
    %c0_i32_1 = arith.constant 0 : i32
    return %c0_i32, %c0_i32_0 : i32, i32
  }
  func.func @transform_3(%arg0: i32) -> (i32, i32) {
    %c0_i32 = arith.constant 0 : i32
    %c0_i32_0 = arith.constant 0 : i32
    %c0_i32_1 = arith.constant 0 : i32
    return %c0_i32, %c0_i32_0 : i32, i32
  }
  func.func @transform_4(%arg0: i32) -> (i32, i32) {
    %c0_i32 = arith.constant 0 : i32
    %c0_i32_0 = arith.constant 0 : i32
    %c0_i32_1 = arith.constant 0 : i32
    return %c0_i32, %c0_i32_0 : i32, i32
  }
  func.func @transform_5(%arg0: i32) -> (i32, i32) {
    %c0_i32 = arith.constant 0 : i32
    %c0_i32_0 = arith.constant 0 : i32
    %c0_i32_1 = arith.constant 0 : i32
    return %c0_i32, %c0_i32_0 : i32, i32
  }
  func.func @transform_6(%arg0: i32) -> (i32, i32) {
    %c0_i32 = arith.constant 0 : i32
    %c0_i32_0 = arith.constant 0 : i32
    %c0_i32_1 = arith.constant 0 : i32
    return %c0_i32, %c0_i32_0 : i32, i32
  }
  func.func @transform_7(%arg0: i32) -> (i32, i32) {
    %c0_i32 = arith.constant 0 : i32
    %c0_i32_0 = arith.constant 0 : i32
    return %arg0, %c0_i32 : i32, i32
  }
}

</mosaic_0001>

<llo_original>
// kernel: _feature_mixer_impl.1
$region0: #{_feature_mixer_impl.1}
  #allocation0 [shape = 'u32[]', space=smem, size = 0x4, offset = 0x4, fixed_abs, tag = 'smem constant byte address 0x4 - core index']
  #allocation1 [shape = 'u32[72,128]{1,0:T(1,128)}', space=vmem, size = 0x9000, scoped, tag = 'internal scratch']
  %s0 = inlined_call_operand.vmem [shape: f32[16,128], index: 0, kind: input, shape index: {}]
  %s1 = inlined_call_operand.vmem [shape: f32[1,128], index: 1, kind: input, shape index: {}]
  %s2 = inlined_call_operand.vmem [shape: f32[1,128], index: 2, kind: input, shape index: {}]
  %s3 = inlined_call_operand.vmem [shape: f32[128,128], index: 3, kind: input, shape index: {}]
  %s4 = inlined_call_operand.vmem [shape: f32[1,128], index: 4, kind: input, shape index: {}]
  %s5 = inlined_call_operand.vmem [shape: f32[128,128], index: 5, kind: input, shape index: {}]
  %s6 = inlined_call_operand.vmem [shape: f32[1,128], index: 6, kind: input, shape index: {}]
  %s7 = inlined_call_operand.vmem [shape: f32[16,128], index: 7, kind: output, shape index: {}]
  %s8 = sld [smem:[#allocation0]]
  $region38: #{_feature_mixer_impl.1} parent=0
    _
  %s10 = ssub.s32 1, %s8
  %s11 = scalar_select 0, %s10, %s8
  // Predicated region
  $region2: #{_feature_mixer_impl.1} parent=0 // pred_check
    _
  $region3: #{_feature_mixer_impl.1} parent=0 // pred_check_branch
    %13 = sbr.rel (0) target = $region5
  $region4: #{_feature_mixer_impl.1} parent=0 // pred_region
    _
  $region5: #{_feature_mixer_impl.1} parent=0 // pred_fallthru
    _
  // Predicated region
  $region6: #{_feature_mixer_impl.1} parent=0 // pred_check
    _
  $region7: #{_feature_mixer_impl.1} parent=0 // pred_check_branch
    %15 = sbr.rel (0) target = $region9
  $region8: #{_feature_mixer_impl.1} parent=0 // pred_region
    _
  $region9: #{_feature_mixer_impl.1} parent=0 // pred_fallthru
    _
  // Predicated region
  $region10: #{_feature_mixer_impl.1} parent=0 // pred_check
    _
  $region11: #{_feature_mixer_impl.1} parent=0 // pred_check_branch
    %17 = sbr.rel (0) target = $region13
  $region12: #{_feature_mixer_impl.1} parent=0 // pred_region
    _
  $region13: #{_feature_mixer_impl.1} parent=0 // pred_fallthru
    _
  // Predicated region
  $region14: #{_feature_mixer_impl.1} parent=0 // pred_check
    _
  $region15: #{_feature_mixer_impl.1} parent=0 // pred_check_branch
    %19 = sbr.rel (0) target = $region17
  $region16: #{_feature_mixer_impl.1} parent=0 // pred_region
    _
  $region17: #{_feature_mixer_impl.1} parent=0 // pred_fallthru
    _
  // Predicated region
  $region18: #{_feature_mixer_impl.1} parent=0 // pred_check
    _
  $region19: #{_feature_mixer_impl.1} parent=0 // pred_check_branch
    %21 = sbr.rel (0) target = $region21
  $region20: #{_feature_mixer_impl.1} parent=0 // pred_region
    _
  $region21: #{_feature_mixer_impl.1} parent=0 // pred_fallthru
    _
  // Predicated region
  $region22: #{_feature_mixer_impl.1} parent=0 // pred_check
    _
  $region23: #{_feature_mixer_impl.1} parent=0 // pred_check_branch
    %23 = sbr.rel (0) target = $region25
  $region24: #{_feature_mixer_impl.1} parent=0 // pred_region
    _
  $region25: #{_feature_mixer_impl.1} parent=0 // pred_fallthru
    _
  // Predicated region
  $region26: #{_feature_mixer_impl.1} parent=0 // pred_check
    _
  $region27: #{_feature_mixer_impl.1} parent=0 // pred_check_branch
    %25 = sbr.rel (0) target = $region29
  $region28: #{_feature_mixer_impl.1} parent=0 // pred_region
    _
  $region29: #{_feature_mixer_impl.1} parent=0 // pred_fallthru
    _
  %v26 = vld [vmem:[%s0] sm:$0xff]
  %v27 = vld [vmem:[%s0 + $0x8] sm:$0xff]
  %28 = vadd.xlane.f32.xlu0 %v26
  %v29 = vpop.xlane.xlu0 %28
  %30 = vadd.xlane.f32.xlu0 %v27
  %v31 = vpop.xlane.xlu0 %30
  %v32 = vmul.f32 %v29, 0.03125
  %v33 = vmul.f32 %v31, 0.03125
  %v34 = vsub.f32 %v26, %v32
  %v35 = vsub.f32 %v27, %v33
  %v36 = vlaneseq
  %v37 = vand.u32 %v36, 127
  %vm38 = vcmp.lt.s32.totalorder %v37, 32
  %v39 = vsel %vm38, %v34, 0.0
  %v40 = vsel %vm38, %v35, 0.0
  %v41 = vmul.f32 %v39, %v39
  %v42 = vmul.f32 %v40, %v40
  %43 = vadd.xlane.f32.xlu0 %v41
  %v44 = vpop.xlane.xlu0 %43
  %45 = vadd.xlane.f32.xlu0 %v42
  %v46 = vpop.xlane.xlu0 %45
  %v47 = vmul.f32 %v44, 0.03125
  %v48 = vmul.f32 %v46, 0.03125
  %v49 = vadd.f32 %v47, 1e-05
  %v50 = vadd.f32 %v48, 1e-05
  %v51 = vrsqrt.pop %v49
  %v52 = vmul.f32 %v51, %v49
  %v53 = vmul.f32 %v52, %v51
  %v54 = vmul.f32 0.5, %v53
  %v55 = vsub.f32 1.5, %v54
  %v56 = vmul.f32 %v51, %v55
  %vm57 = vweird.f32 %v49
  %vm58 = vweird.f32 %v51
  %vm59 = vmor %vm57, %vm58
  %v60 = vsel %vm59, %v51, %v56
  %v61 = vrsqrt.pop %v50
  %v62 = vmul.f32 %v61, %v50
  %v63 = vmul.f32 %v62, %v61
  %v64 = vmul.f32 0.5, %v63
  %v65 = vsub.f32 1.5, %v64
  %v66 = vmul.f32 %v61, %v65
  %vm67 = vweird.f32 %v50
  %vm68 = vweird.f32 %v61
  %vm69 = vmor %vm67, %vm68
  %v70 = vsel %vm69, %v61, %v66
  %v71 = vmul.f32 %v34, %v60
  %v72 = vmul.f32 %v35, %v70
  %v73 = vld [vmem:[%s1] sm:$0x1]
  %v75 = vperm.slane %v73, 0
  %v77 = vmul.f32 %v71, %v75
  %v78 = vmul.f32 %v72, %v75
  %v79 = vld [vmem:[%s2] sm:$0x1]
  %v81 = vperm.slane %v79, 0
  %v83 = vadd.f32 %v77, %v81
  %v84 = vadd.f32 %v78, %v81
  %v85 = vld [vmem:[%s3] sm:$0xff]
  %v86 = vld [vmem:[%s3 + $0x8] sm:$0xff]
  %v87 = vld [vmem:[%s3 + $0x10] sm:$0xff]
  %v88 = vld [vmem:[%s3 + $0x18] sm:$0xff]
  %v89 = vld [vmem:[%s3 + $0x20] sm:$0xff]
  %v90 = vld [vmem:[%s3 + $0x28] sm:$0xff]
  %v91 = vld [vmem:[%s3 + $0x30] sm:$0xff]
  %v92 = vld [vmem:[%s3 + $0x38] sm:$0xff]
  %v93 = vld [vmem:[%s3 + $0x40] sm:$0xff]
  %v94 = vld [vmem:[%s3 + $0x48] sm:$0xff]
  %v95 = vld [vmem:[%s3 + $0x50] sm:$0xff]
  %v96 = vld [vmem:[%s3 + $0x58] sm:$0xff]
  %v97 = vld [vmem:[%s3 + $0x60] sm:$0xff]
  %v98 = vld [vmem:[%s3 + $0x68] sm:$0xff]
  %v99 = vld [vmem:[%s3 + $0x70] sm:$0xff]
  %v100 = vld [vmem:[%s3 + $0x78] sm:$0xff]
  %v101 = vld [vmem:[%s4] sm:$0x1]
  %v103 = vperm.slane %v101, 0
  %105 = vmatpush.msra.mxu0 %v100
  %106 = vmatpush.msra.mxu0 %v99
  %107 = vmatpush.msra.mxu0 %v98
  %108 = vmatpush.msra.mxu0 %v97
  %109 = vmatpush.msra.mxu0 %v96
  %110 = vmatpush.msra.mxu0 %v95
  %111 = vmatpush.msra.mxu0 %v94
  %112 = vmatpush.msra.mxu0 %v93
  %113 = vmatpush.msra.mxu0 %v92
  %114 = vmatpush.msra.mxu0 %v91
  %115 = vmatpush.msra.mxu0 %v90
  %116 = vmatpush.msra.mxu0 %v89
  %117 = vmatpush.msra.mxu0 %v88
  %118 = vmatpush.msra.mxu0 %v87
  %119 = vmatpush.msra.mxu0 %v86
  %120 = vmatpush.msra.mxu0 %v85
  %121 = vmatmul.f32.gmra.mxu0 %v83
  %v122 = vpop.f32.mrf.mxu0
  %v123 = vadd.f32 %v103, %v122
  %124 = vmatmul.f32.gmra.mxu0 %v84
  %v125 = vpop.f32.mrf.mxu0
  %v126 = vadd.f32 %v103, %v125
  %127 = vdwg.mxu0
  %v128 = vmax.f32 %v123, 0.0
  %v129 = vmax.f32 %v126, 0.0
  %v130 = vld [vmem:[%s5] sm:$0xff]
  %v131 = vld [vmem:[%s5 + $0x8] sm:$0xff]
  %v132 = vld [vmem:[%s5 + $0x10] sm:$0xff]
  %v133 = vld [vmem:[%s5 + $0x18] sm:$0xff]
  %v134 = vld [vmem:[%s5 + $0x20] sm:$0xff]
  %v135 = vld [vmem:[%s5 + $0x28] sm:$0xff]
  %v136 = vld [vmem:[%s5 + $0x30] sm:$0xff]
  %v137 = vld [vmem:[%s5 + $0x38] sm:$0xff]
  %v138 = vld [vmem:[%s5 + $0x40] sm:$0xff]
  %v139 = vld [vmem:[%s5 + $0x48] sm:$0xff]
  %v140 = vld [vmem:[%s5 + $0x50] sm:$0xff]
  %v141 = vld [vmem:[%s5 + $0x58] sm:$0xff]
  %v142 = vld [vmem:[%s5 + $0x60] sm:$0xff]
  %v143 = vld [vmem:[%s5 + $0x68] sm:$0xff]
  %v144 = vld [vmem:[%s5 + $0x70] sm:$0xff]
  %v145 = vld [vmem:[%s5 + $0x78] sm:$0xff]
  %v146 = vld [vmem:[%s6] sm:$0x1]
  %v148 = vperm.slane %v146, 0
  %150 = vmatpush.msra.mxu0 %v145
  %151 = vmatpush.msra.mxu0 %v144
  %152 = vmatpush.msra.mxu0 %v143
  %153 = vmatpush.msra.mxu0 %v142
  %154 = vmatpush.msra.mxu0 %v141
  %155 = vmatpush.msra.mxu0 %v140
  %156 = vmatpush.msra.mxu0 %v139
  %157 = vmatpush.msra.mxu0 %v138
  %158 = vmatpush.msra.mxu0 %v137
  %159 = vmatpush.msra.mxu0 %v136
  %160 = vmatpush.msra.mxu0 %v135
  %161 = vmatpush.msra.mxu0 %v134
  %162 = vmatpush.msra.mxu0 %v133
  %163 = vmatpush.msra.mxu0 %v132
  %164 = vmatpush.msra.mxu0 %v131
  %165 = vmatpush.msra.mxu0 %v130
  %166 = vmatmul.f32.gmra.mxu0 %v128
  %v167 = vpop.f32.mrf.mxu0
  %v168 = vadd.f32 %v148, %v167
  %169 = vmatmul.f32.gmra.mxu0 %v129
  %v170 = vpop.f32.mrf.mxu0
  %v171 = vadd.f32 %v148, %v170
  %172 = vdwg.mxu0
  %v173 = vadd.f32 %v168, %v26
  %v174 = vadd.f32 %v171, %v27
  %175 = vst [vmem:[%s7] sm:$0xff] %v173
  %176 = vst [vmem:[%s7 + $0x8] sm:$0xff] %v174
  // Predicated region
  $region30: #{_feature_mixer_impl.1} parent=0 // pred_check
    _
  $region31: #{_feature_mixer_impl.1} parent=0 // pred_check_branch
    %178 = sbr.rel (0) target = $region33
  $region32: #{_feature_mixer_impl.1} parent=0 // pred_region
    _
  $region33: #{_feature_mixer_impl.1} parent=0 // pred_fallthru
    _
  // Predicated region
  $region34: #{_feature_mixer_impl.1} parent=0 // pred_check
    _
  $region35: #{_feature_mixer_impl.1} parent=0 // pred_check_branch
    %180 = sbr.rel (0) target = $region37
  $region36: #{_feature_mixer_impl.1} parent=0 // pred_region
    _
  $region37: #{_feature_mixer_impl.1} parent=0 // pred_fallthru
    _

// kernel: _feature_mixer_impl.1
$region0: #{_feature_mixer_impl.1}
  #allocation0 [shape = 'u32[]', space=smem, size = 0x4, offset = 0x4, fixed_abs, tag = 'smem constant byte address 0x4 - core index']
  #allocation1 [shape = 'u32[72,128]{1,0:T(1,128)}', space=vmem, size = 0x9000, scoped, tag = 'internal scratch']
  %s0 = inlined_call_operand.vmem [shape: f32[16,128], index: 0, kind: input, shape index: {}]
  %s1 = inlined_call_operand.vmem [shape: f32[1,128], index: 1, kind: input, shape index: {}]
  %s2 = inlined_call_operand.vmem [shape: f32[1,128], index: 2, kind: input, shape index: {}]
  %s3 = inlined_call_operand.vmem [shape: f32[128,128], index: 3, kind: input, shape index: {}]
  %s4 = inlined_call_operand.vmem [shape: f32[1,128], index: 4, kind: input, shape index: {}]
  %s5 = inlined_call_operand.vmem [shape: f32[128,128], index: 5, kind: input, shape index: {}]
  %s6 = inlined_call_operand.vmem [shape: f32[1,128], index: 6, kind: input, shape index: {}]
  %s7 = inlined_call_operand.vmem [shape: f32[16,128], index: 7, kind: output, shape index: {}]
  %s8 = sld [smem:[#allocation0]]
  $region38: #{_feature_mixer_impl.1} parent=0
    _
  %s10 = ssub.s32 1, %s8
  %s11 = scalar_select 0, %s10, %s8
  // Predicated region
  $region2: #{_feature_mixer_impl.1} parent=0 // pred_check
    _
  $region3: #{_feature_mixer_impl.1} parent=0 // pred_check_branch
    %13 = sbr.rel (0) target = $region5
  $region4: #{_feature_mixer_impl.1} parent=0 // pred_region
    _
  $region5: #{_feature_mixer_impl.1} parent=0 // pred_fallthru
    _
  // Predicated region
  $region6: #{_feature_mixer_impl.1} parent=0 // pred_check
    _
  $region7: #{_feature_mixer_impl.1} parent=0 // pred_check_branch
    %15 = sbr.rel (0) target = $region9
  $region8: #{_feature_mixer_impl.1} parent=0 // pred_region
    _
  $region9: #{_feature_mixer_impl.1} parent=0 // pred_fallthru
    _
  // Predicated region
  $region10: #{_feature_mixer_impl.1} parent=0 // pred_check
    _
  $region11: #{_feature_mixer_impl.1} parent=0 // pred_check_branch
    %17 = sbr.rel (0) target = $region13
  $region12: #{_feature_mixer_impl.1} parent=0 // pred_region
    _
  $region13: #{_feature_mixer_impl.1} parent=0 // pred_fallthru
    _
  // Predicated region
  $region14: #{_feature_mixer_impl.1} parent=0 // pred_check
    _
  $region15: #{_feature_mixer_impl.1} parent=0 // pred_check_branch
    %19 = sbr.rel (0) target = $region17
  $region16: #{_feature_mixer_impl.1} parent=0 // pred_region
    _
  $region17: #{_feature_mixer_impl.1} parent=0 // pred_fallthru
    _
  // Predicated region
  $region18: #{_feature_mixer_impl.1} parent=0 // pred_check
    _
  $region19: #{_feature_mixer_impl.1} parent=0 // pred_check_branch
    %21 = sbr.rel (0) target = $region21
  $region20: #{_feature_mixer_impl.1} parent=0 // pred_region
    _
  $region21: #{_feature_mixer_impl.1} parent=0 // pred_fallthru
    _
  // Predicated region
  $region22: #{_feature_mixer_impl.1} parent=0 // pred_check
    _
  $region23: #{_feature_mixer_impl.1} parent=0 // pred_check_branch
    %23 = sbr.rel (0) target = $region25
  $region24: #{_feature_mixer_impl.1} parent=0 // pred_region
    _
  $region25: #{_feature_mixer_impl.1} parent=0 // pred_fallthru
    _
  // Predicated region
  $region26: #{_feature_mixer_impl.1} parent=0 // pred_check
    _
  $region27: #{_feature_mixer_impl.1} parent=0 // pred_check_branch
    %25 = sbr.rel (0) target = $region29
  $region28: #{_feature_mixer_impl.1} parent=0 // pred_region
    _
  $region29: #{_feature_mixer_impl.1} parent=0 // pred_fallthru
    _
  %v26 = vld [vmem:[%s0] sm:$0xff]
  %v27 = vld [vmem:[%s0 + $0x8] sm:$0xff]
  %28 = vadd.xlane.f32.xlu0 %v26
  %v29 = vpop.xlane.xlu0 %28
  %30 = vadd.xlane.f32.xlu0 %v27
  %v31 = vpop.xlane.xlu0 %30
  %v32 = vmul.f32 %v29, 0.03125
  %v33 = vmul.f32 %v31, 0.03125
  %v34 = vsub.f32 %v26, %v32
  %v35 = vsub.f32 %v27, %v33
  %v36 = vlaneseq
  %v37 = vand.u32 %v36, 127
  %vm38 = vcmp.lt.s32.totalorder %v37, 32
  %v39 = vsel %vm38, %v34, 0.0
  %v40 = vsel %vm38, %v35, 0.0
  %v41 = vmul.f32 %v39, %v39
  %v42 = vmul.f32 %v40, %v40
  %43 = vadd.xlane.f32.xlu0 %v41
  %v44 = vpop.xlane.xlu0 %43
  %45 = vadd.xlane.f32.xlu0 %v42
  %v46 = vpop.xlane.xlu0 %45
  %v47 = vmul.f32 %v44, 0.03125
  %v48 = vmul.f32 %v46, 0.03125
  %v49 = vadd.f32 %v47, 1e-05
  %v50 = vadd.f32 %v48, 1e-05
  %v51 = vrsqrt.pop %v49
  %v52 = vmul.f32 %v51, %v49
  %v53 = vmul.f32 %v52, %v51
  %v54 = vmul.f32 0.5, %v53
  %v55 = vsub.f32 1.5, %v54
  %v56 = vmul.f32 %v51, %v55
  %vm57 = vweird.f32 %v49
  %vm58 = vweird.f32 %v51
  %vm59 = vmor %vm57, %vm58
  %v60 = vsel %vm59, %v51, %v56
  %v61 = vrsqrt.pop %v50
  %v62 = vmul.f32 %v61, %v50
  %v63 = vmul.f32 %v62, %v61
  %v64 = vmul.f32 0.5, %v63
  %v65 = vsub.f32 1.5, %v64
  %v66 = vmul.f32 %v61, %v65
  %vm67 = vweird.f32 %v50
  %vm68 = vweird.f32 %v61
  %vm69 = vmor %vm67, %vm68
  %v70 = vsel %vm69, %v61, %v66
  %v71 = vmul.f32 %v34, %v60
  %v72 = vmul.f32 %v35, %v70
  %v73 = vld [vmem:[%s1] sm:$0x1]
  %v75 = vperm.slane %v73, 0
  %v77 = vmul.f32 %v71, %v75
  %v78 = vmul.f32 %v72, %v75
  %v79 = vld [vmem:[%s2] sm:$0x1]
  %v81 = vperm.slane %v79, 0
  %v83 = vadd.f32 %v77, %v81
  %v84 = vadd.f32 %v78, %v81
  %v85 = vld [vmem:[%s3] sm:$0xff]
  %v86 = vld [vmem:[%s3 + $0x8] sm:$0xff]
  %v87 = vld [vmem:[%s3 + $0x10] sm:$0xff]
  %v88 = vld [vmem:[%s3 + $0x18] sm:$0xff]
  %v89 = vld [vmem:[%s3 + $0x20] sm:$0xff]
  %v90 = vld [vmem:[%s3 + $0x28] sm:$0xff]
  %v91 = vld [vmem:[%s3 + $0x30] sm:$0xff]
  %v92 = vld [vmem:[%s3 + $0x38] sm:$0xff]
  %v93 = vld [vmem:[%s3 + $0x40] sm:$0xff]
  %v94 = vld [vmem:[%s3 + $0x48] sm:$0xff]
  %v95 = vld [vmem:[%s3 + $0x50] sm:$0xff]
  %v96 = vld [vmem:[%s3 + $0x58] sm:$0xff]
  %v97 = vld [vmem:[%s3 + $0x60] sm:$0xff]
  %v98 = vld [vmem:[%s3 + $0x68] sm:$0xff]
  %v99 = vld [vmem:[%s3 + $0x70] sm:$0xff]
  %v100 = vld [vmem:[%s3 + $0x78] sm:$0xff]
  %v101 = vld [vmem:[%s4] sm:$0x1]
  %v103 = vperm.slane %v101, 0
  %105 = vmatpush.msra.mxu0 %v100
  %106 = vmatpush.msra.mxu0 %v99
  %107 = vmatpush.msra.mxu0 %v98
  %108 = vmatpush.msra.mxu0 %v97
  %109 = vmatpush.msra.mxu0 %v96
  %110 = vmatpush.msra.mxu0 %v95
  %111 = vmatpush.msra.mxu0 %v94
  %112 = vmatpush.msra.mxu0 %v93
  %113 = vmatpush.msra.mxu0 %v92
  %114 = vmatpush.msra.mxu0 %v91
  %115 = vmatpush.msra.mxu0 %v90
  %116 = vmatpush.msra.mxu0 %v89
  %117 = vmatpush.msra.mxu0 %v88
  %118 = vmatpush.msra.mxu0 %v87
  %119 = vmatpush.msra.mxu0 %v86
  %120 = vmatpush.msra.mxu0 %v85
  %121 = vmatmul.f32.gmra.mxu0 %v83
  %v122 = vpop.f32.mrf.mxu0
  %v123 = vadd.f32 %v103, %v122
  %124 = vmatmul.f32.gmra.mxu0 %v84
  %v125 = vpop.f32.mrf.mxu0
  %v126 = vadd.f32 %v103, %v125
  %127 = vdwg.mxu0
  %v128 = vmax.f32 %v123, 0.0
  %v129 = vmax.f32 %v126, 0.0
  %v130 = vld [vmem:[%s5] sm:$0xff]
  %v131 = vld [vmem:[%s5 + $0x8] sm:$0xff]
  %v132 = vld [vmem:[%s5 + $0x10] sm:$0xff]
  %v133 = vld [vmem:[%s5 + $0x18] sm:$0xff]
  %v134 = vld [vmem:[%s5 + $0x20] sm:$0xff]
  %v135 = vld [vmem:[%s5 + $0x28] sm:$0xff]
  %v136 = vld [vmem:[%s5 + $0x30] sm:$0xff]
  %v137 = vld [vmem:[%s5 + $0x38] sm:$0xff]
  %v138 = vld [vmem:[%s5 + $0x40] sm:$0xff]
  %v139 = vld [vmem:[%s5 + $0x48] sm:$0xff]
  %v140 = vld [vmem:[%s5 + $0x50] sm:$0xff]
  %v141 = vld [vmem:[%s5 + $0x58] sm:$0xff]
  %v142 = vld [vmem:[%s5 + $0x60] sm:$0xff]
  %v143 = vld [vmem:[%s5 + $0x68] sm:$0xff]
  %v144 = vld [vmem:[%s5 + $0x70] sm:$0xff]
  %v145 = vld [vmem:[%s5 + $0x78] sm:$0xff]
  %v146 = vld [vmem:[%s6] sm:$0x1]
  %v148 = vperm.slane %v146, 0
  %150 = vmatpush.msra.mxu0 %v145
  %151 = vmatpush.msra.mxu0 %v144
  %152 = vmatpush.msra.mxu0 %v143
  %153 = vmatpush.msra.mxu0 %v142
  %154 = vmatpush.msra.mxu0 %v141
  %155 = vmatpush.msra.mxu0 %v140
  %156 = vmatpush.msra.mxu0 %v139
  %157 = vmatpush.msra.mxu0 %v138
  %158 = vmatpush.msra.mxu0 %v137
  %159 = vmatpush.msra.mxu0 %v136
  %160 = vmatpush.msra.mxu0 %v135
  %161 = vmatpush.msra.mxu0 %v134
  %162 = vmatpush.msra.mxu0 %v133
  %163 = vmatpush.msra.mxu0 %v132
  %164 = vmatpush.msra.mxu0 %v131
  %165 = vmatpush.msra.mxu0 %v130
  %166 = vmatmul.f32.gmra.mxu0 %v128
  %v167 = vpop.f32.mrf.mxu0
  %v168 = vadd.f32 %v148, %v167
  %169 = vmatmul.f32.gmra.mxu0 %v129
  %v170 = vpop.f32.mrf.mxu0
  %v171 = vadd.f32 %v148, %v170
  %172 = vdwg.mxu0
  %v173 = vadd.f32 %v168, %v26
  %v174 = vadd.f32 %v171, %v27
  %175 = vst [vmem:[%s7] sm:$0xff] %v173
  %176 = vst [vmem:[%s7 + $0x8] sm:$0xff] %v174
  // Predicated region
  $region30: #{_feature_mixer_impl.1} parent=0 // pred_check
    _
  $region31: #{_feature_mixer_impl.1} parent=0 // pred_check_branch
    %178 = sbr.rel (0) target = $region33
  $region32: #{_feature_mixer_impl.1} parent=0 // pred_region
    _
  $region33: #{_feature_mixer_impl.1} parent=0 // pred_fallthru
    _
  // Predicated region
  $region34: #{_feature_mixer_impl.1} parent=0 // pred_check
    _
  $region35: #{_feature_mixer_impl.1} parent=0 // pred_check_branch
    %180 = sbr.rel (0) target = $region37
  $region36: #{_feature_mixer_impl.1} parent=0 // pred_region
    _
  $region37: #{_feature_mixer_impl.1} parent=0 // pred_fallthru
    _

</llo_original>
